<compile_context>
chip_gen: v6e
topology: v6e:2x2x1
jax: 0.10.0
libtpu: 0.0.40
codegen_flags: <defaults>
</compile_context>

<pallas_src>
import jax
import jax.numpy as jnp
from jax.experimental import pallas as pl
from jax.experimental.pallas import tpu as pltpu


def _round_up(x, m):
    return ((x + m - 1) // m) * m


def _discriminator_kernel(x_ref, s_ref, w1x_ref, w1s_ref, b1_ref,
                          w2_ref, b2_ref, w3_ref, b3_ref, o_ref):
    # Layer 1: split-K matmul over the implicit (X | S) concat.
    h1 = (jnp.dot(x_ref[...], w1x_ref[...], preferred_element_type=jnp.float32)
          + jnp.dot(s_ref[...], w1s_ref[...], preferred_element_type=jnp.float32)
          + b1_ref[...])
    h1 = jnp.maximum(h1, 0.0)

    # Layer 2.
    h2 = (jnp.dot(h1.astype(w2_ref.dtype), w2_ref[...],
                  preferred_element_type=jnp.float32)
          + b2_ref[...])
    h2 = jnp.maximum(h2, 0.0)

    # Layer 3 (H2 -> 1): contract the W3 row against h2 over the hidden axis so
    # the result lands lane-dense as (1, tile_b) -- batch on lanes, unmasked
    # full-width store instead of a (tile_b, 1) masked column store.
    logits = jax.lax.dot_general(
        w3_ref[...].astype(h2.dtype), h2,
        dimension_numbers=(((1,), (1,)), ((), ())),
        preferred_element_type=jnp.float32)                 # (1, tile_b)
    o_ref[...] = (logits + b3_ref[0, 0]).astype(o_ref.dtype)


def discriminator_forward(X, S, params, *, tile_b=None,
                          compute_dtype=jnp.float32):
    """Fused 3-layer MLP forward.  params = (w1, b1, w2, b2, w3, b3) with
    weights stored (in_features, out_features) so x @ W + b == PyTorch
    x @ W_pt.T + b."""
    w1, b1, w2, b2, w3, b3 = params
    B, x_dim = X.shape
    s_dim = S.shape[1]
    H1, H2 = w1.shape[1], w2.shape[1]

    # Lane-align hidden dims (zero padding is numerically inert).
    H1p = _round_up(H1, 128)
    H2p = _round_up(H2, 128)

    # Batch tile: 128-aligned lanes for the lane-dense output; >=2 grid steps
    # when the batch allows it (megacore / v7x dual TensorCore).
    if tile_b is None:
        tile_b = max(128, min(512, _round_up(pl.cdiv(B, 2), 128)))
    tile_b = _round_up(tile_b, 128)
    Bp = _round_up(B, tile_b)
    num_tiles = Bp // tile_b

    # Split W1 by input rows so X and S are consumed directly (no concat).
    def pad2(a, rows, cols):
        return jnp.pad(a, ((0, rows - a.shape[0]), (0, cols - a.shape[1])))

    w1x = pad2(w1[:x_dim], x_dim, H1p).astype(compute_dtype)
    w1s = pad2(w1[x_dim:], s_dim, H1p).astype(compute_dtype)
    b1p = pad2(b1, 1, H1p).astype(jnp.float32)
    w2p = pad2(w2, H1p, H2p).astype(compute_dtype)
    b2p = pad2(b2, 1, H2p).astype(jnp.float32)
    w3r = pad2(w3.T, 1, H2p).astype(compute_dtype)          # (1, H2p) row
    b3s = b3.reshape(1, 1).astype(jnp.float32)               # SMEM scalar

    Xp = X if Bp == B else jnp.pad(X, ((0, Bp - B), (0, 0)))
    Sp = S if Bp == B else jnp.pad(S, ((0, Bp - B), (0, 0)))
    Xp = Xp.astype(compute_dtype)
    Sp = Sp.astype(compute_dtype)

    out = pl.pallas_call(
        _discriminator_kernel,
        out_shape=jax.ShapeDtypeStruct((1, Bp), jnp.float32),
        grid_spec=pltpu.PrefetchScalarGridSpec(
            num_scalar_prefetch=0,
            grid=(num_tiles,),                               # tile over batch
            in_specs=[
                pl.BlockSpec((tile_b, x_dim), lambda i: (i, 0)),   # X tile
                pl.BlockSpec((tile_b, s_dim), lambda i: (i, 0)),   # S tile
                pl.BlockSpec((x_dim, H1p), lambda i: (0, 0)),      # W1[:x_dim]
                pl.BlockSpec((s_dim, H1p), lambda i: (0, 0)),      # W1[x_dim:]
                pl.BlockSpec((1, H1p), lambda i: (0, 0)),          # b1
                pl.BlockSpec((H1p, H2p), lambda i: (0, 0)),        # W2
                pl.BlockSpec((1, H2p), lambda i: (0, 0)),          # b2
                pl.BlockSpec((1, H2p), lambda i: (0, 0)),          # W3 row
                pl.BlockSpec(memory_space=pltpu.MemorySpace.SMEM),  # b3 scalar
            ],
            # Lane-dense output: batch on the lane axis, one row total.
            out_specs=pl.BlockSpec((1, tile_b), lambda i: (0, i)),
        ),
        compiler_params=pltpu.CompilerParams(
            dimension_semantics=("parallel",),
            vmem_limit_bytes=32 * 1024 * 1024,
        ),
    )(Xp, Sp, w1x, w1s, b1p, w2p, b2p, w3r, b3s)

    # (1, Bp) lane-dense slab -> (B, 1) column (drop batch padding).
    return out[0, :B].reshape(B, 1)


def init_params(key, x_dim, s_dim, layers=(64, 32)):
    """Deterministic synthetic init mirroring nn.Linear shapes (scaled down)."""
    total_dim = x_dim + s_dim
    dims = [total_dim] + list(layers) + [1]
    keys = jax.random.split(key, 2 * (len(dims) - 1))
    params = []
    for i in range(len(dims) - 1):
        fan_in, fan_out = dims[i], dims[i + 1]
        bound = 1.0 / jnp.sqrt(jnp.float32(fan_in))
        w = jax.random.uniform(keys[2 * i], (fan_in, fan_out), jnp.float32, -bound, bound)
        b = jax.random.uniform(keys[2 * i + 1], (1, fan_out), jnp.float32, -bound, bound)
        params += [w, b]
    return tuple(params)


if __name__ == "__main__":
    # Small shapes consistent with the module: X:(B, x_dim), S:(B, s_dim),
    # hidden layers (64, 32) as a scaled-down analogue of '1200 600'.
    # B=256 with tile_b=128 -> 2 parallel grid steps (exercises megacore path).
    B, x_dim, s_dim = 256, 48, 16
    key = jax.random.PRNGKey(0)
    kx, ks, kp = jax.random.split(key, 3)
    X = jax.random.normal(kx, (B, x_dim), jnp.float32)
    S = jax.random.normal(ks, (B, s_dim), jnp.float32)
    params = init_params(kp, x_dim, s_dim, layers=(64, 32))

    # f32 compute here for an exact reference check; pass
    # compute_dtype=jnp.bfloat16 on v6e/v7x for the bf16 fast path.
    out = discriminator_forward(X, S, params, tile_b=128,
                                compute_dtype=jnp.float32)
    out = jax.block_until_ready(out)

    # Plain-JAX reference of the exact same math (PyTorch: XS @ W.T + b).
    w1, b1, w2, b2, w3, b3 = params
    XS = jnp.concatenate([X, S], axis=1)
    h1 = jnp.maximum(XS @ w1 + b1, 0.0)
    h2 = jnp.maximum(h1 @ w2 + b2, 0.0)
    ref = h2 @ w3 + b3

    assert out.shape == (B, 1), out.shape
    assert jnp.allclose(out, ref, atol=1e-4, rtol=1e-4), \
        float(jnp.max(jnp.abs(out - ref)))
    # TODO(synk): dis_loss / mse_loss are training-time glue, not part of the
    # forward pass, and are left to plain JAX.
    print("KERNEL_OK")
</pallas_src>

<mosaic_0001>
module attributes {stable_mosaic.version = 11 : i64} {
  func.func @_discriminator_kernel(%arg0: i32, %arg1: memref<128x48xf32, #tpu.memory_space<vmem>>, %arg2: memref<128x16xf32, #tpu.memory_space<vmem>>, %arg3: memref<48x128xf32, #tpu.memory_space<vmem>>, %arg4: memref<16x128xf32, #tpu.memory_space<vmem>>, %arg5: memref<1x128xf32, #tpu.memory_space<vmem>>, %arg6: memref<128x128xf32, #tpu.memory_space<vmem>>, %arg7: memref<1x128xf32, #tpu.memory_space<vmem>>, %arg8: memref<1x128xf32, #tpu.memory_space<vmem>>, %arg9: memref<1x1xf32, #tpu.memory_space<smem>>, %arg10: memref<1x128xf32, #tpu.memory_space<vmem>>) attributes {dimension_semantics = [#tpu.dimension_semantics<parallel>], iteration_bounds = array<i64: 2>, scalar_prefetch = 0 : i64, scratch_operands = 0 : i64, tpu.core_type = #tpu.core_type<tc>, window_params = [{transform_indices = @transform_0, window_bounds = array<i64: 128, 48>}, {transform_indices = @transform_1, window_bounds = array<i64: 128, 16>}, {pipeline_mode = #tpu.pipeline_mode<synchronous>, transform_indices = @transform_2, window_bounds = array<i64: 48, 128>}, {pipeline_mode = #tpu.pipeline_mode<synchronous>, transform_indices = @transform_3, window_bounds = array<i64: 16, 128>}, {pipeline_mode = #tpu.pipeline_mode<synchronous>, transform_indices = @transform_4, window_bounds = array<i64: 1, 128>}, {pipeline_mode = #tpu.pipeline_mode<synchronous>, transform_indices = @transform_5, window_bounds = array<i64: 128, 128>}, {pipeline_mode = #tpu.pipeline_mode<synchronous>, transform_indices = @transform_6, window_bounds = array<i64: 1, 128>}, {pipeline_mode = #tpu.pipeline_mode<synchronous>, transform_indices = @transform_7, window_bounds = array<i64: 1, 128>}, {transform_indices = @transform_8, window_bounds = array<i64: 1, 1>}, {transform_indices = @transform_9, window_bounds = array<i64: 1, 128>}]} {
    %c0 = arith.constant 0 : index
    %c0_0 = arith.constant 0 : index
    %0 = vector.load %arg1[%c0, %c0_0] : memref<128x48xf32, #tpu.memory_space<vmem>>, vector<128x48xf32>
    %c0_1 = arith.constant 0 : index
    %c0_2 = arith.constant 0 : index
    %1 = vector.load %arg3[%c0_1, %c0_2] : memref<48x128xf32, #tpu.memory_space<vmem>>, vector<48x128xf32>
    %cst = arith.constant dense<0.000000e+00> : vector<128x128xf32>
    %2 = tpu.matmul %0, %1, %cst {dimension_numbers = #tpu.dot_dimension_numbers<[1], [0], [0], [1], [0, 0, 1, 1], [], []>} : vector<128x48xf32>, vector<48x128xf32>, vector<128x128xf32> -> vector<128x128xf32>
    %c0_3 = arith.constant 0 : index
    %c0_4 = arith.constant 0 : index
    %3 = vector.load %arg2[%c0_3, %c0_4] : memref<128x16xf32, #tpu.memory_space<vmem>>, vector<128x16xf32>
    %c0_5 = arith.constant 0 : index
    %c0_6 = arith.constant 0 : index
    %4 = vector.load %arg4[%c0_5, %c0_6] : memref<16x128xf32, #tpu.memory_space<vmem>>, vector<16x128xf32>
    %cst_7 = arith.constant dense<0.000000e+00> : vector<128x128xf32>
    %5 = tpu.matmul %3, %4, %cst_7 {dimension_numbers = #tpu.dot_dimension_numbers<[1], [0], [0], [1], [0, 0, 1, 1], [], []>} : vector<128x16xf32>, vector<16x128xf32>, vector<128x128xf32> -> vector<128x128xf32>
    %6 = arith.addf %2, %5 : vector<128x128xf32>
    %c0_8 = arith.constant 0 : index
    %c0_9 = arith.constant 0 : index
    %7 = vector.load %arg5[%c0_8, %c0_9] : memref<1x128xf32, #tpu.memory_space<vmem>>, vector<1x128xf32>
    %8 = vector.broadcast %7 : vector<1x128xf32> to vector<128x128xf32>
    %9 = arith.addf %6, %8 : vector<128x128xf32>
    %cst_10 = arith.constant 0.000000e+00 : f32
    %10 = vector.broadcast %cst_10 : f32 to vector<128x128xf32>
    %11 = arith.maximumf %9, %10 : vector<128x128xf32>
    %c0_11 = arith.constant 0 : index
    %c0_12 = arith.constant 0 : index
    %12 = vector.load %arg6[%c0_11, %c0_12] : memref<128x128xf32, #tpu.memory_space<vmem>>, vector<128x128xf32>
    %cst_13 = arith.constant dense<0.000000e+00> : vector<128x128xf32>
    %13 = tpu.matmul %11, %12, %cst_13 {dimension_numbers = #tpu.dot_dimension_numbers<[1], [0], [0], [1], [0, 0, 1, 1], [], []>} : vector<128x128xf32>, vector<128x128xf32>, vector<128x128xf32> -> vector<128x128xf32>
    %c0_14 = arith.constant 0 : index
    %c0_15 = arith.constant 0 : index
    %14 = vector.load %arg7[%c0_14, %c0_15] : memref<1x128xf32, #tpu.memory_space<vmem>>, vector<1x128xf32>
    %15 = vector.broadcast %14 : vector<1x128xf32> to vector<128x128xf32>
    %16 = arith.addf %13, %15 : vector<128x128xf32>
    %cst_16 = arith.constant 0.000000e+00 : f32
    %17 = vector.broadcast %cst_16 : f32 to vector<128x128xf32>
    %18 = arith.maximumf %16, %17 : vector<128x128xf32>
    %c0_17 = arith.constant 0 : index
    %c0_18 = arith.constant 0 : index
    %19 = vector.load %arg8[%c0_17, %c0_18] : memref<1x128xf32, #tpu.memory_space<vmem>>, vector<1x128xf32>
    %cst_19 = arith.constant dense<0.000000e+00> : vector<1x128xf32>
    %20 = tpu.matmul %19, %18, %cst_19 {dimension_numbers = #tpu.dot_dimension_numbers<[1], [1], [0], [0], [0, 0, 1, 0], [], []>} : vector<1x128xf32>, vector<128x128xf32>, vector<1x128xf32> -> vector<1x128xf32>
    %c0_20 = arith.constant 0 : index
    %c0_21 = arith.constant 0 : index
    %21 = memref.load %arg9[%c0_20, %c0_21] : memref<1x1xf32, #tpu.memory_space<smem>>
    %22 = vector.broadcast %21 : f32 to vector<1x128xf32>
    %23 = arith.addf %20, %22 : vector<1x128xf32>
    %c0_22 = arith.constant 0 : index
    %c0_23 = arith.constant 0 : index
    %24 = vector.load %arg10[%c0_22, %c0_23] : memref<1x128xf32, #tpu.memory_space<vmem>>, vector<1x128xf32>
    tpu.vector_store %arg10[%c0_22, %c0_23], %23 {strides = array<i32>} : memref<1x128xf32, #tpu.memory_space<vmem>>, vector<1x128xf32>,
    return
  }
  func.func @transform_0(%arg0: i32) -> (i32, i32) {
    %c0_i32 = arith.constant 0 : i32
    %c0_i32_0 = arith.constant 0 : i32
    return %arg0, %c0_i32 : i32, i32
  }
  func.func @transform_1(%arg0: i32) -> (i32, i32) {
    %c0_i32 = arith.constant 0 : i32
    %c0_i32_0 = arith.constant 0 : i32
    return %arg0, %c0_i32 : i32, i32
  }
  func.func @transform_2(%arg0: i32) -> (i32, i32) {
    %c0_i32 = arith.constant 0 : i32
    %c0_i32_0 = arith.constant 0 : i32
    %c0_i32_1 = arith.constant 0 : i32
    return %c0_i32, %c0_i32_0 : i32, i32
  }
  func.func @transform_3(%arg0: i32) -> (i32, i32) {
    %c0_i32 = arith.constant 0 : i32
    %c0_i32_0 = arith.constant 0 : i32
    %c0_i32_1 = arith.constant 0 : i32
    return %c0_i32, %c0_i32_0 : i32, i32
  }
  func.func @transform_4(%arg0: i32) -> (i32, i32) {
    %c0_i32 = arith.constant 0 : i32
    %c0_i32_0 = arith.constant 0 : i32
    %c0_i32_1 = arith.constant 0 : i32
    return %c0_i32, %c0_i32_0 : i32, i32
  }
  func.func @transform_5(%arg0: i32) -> (i32, i32) {
    %c0_i32 = arith.constant 0 : i32
    %c0_i32_0 = arith.constant 0 : i32
    %c0_i32_1 = arith.constant 0 : i32
    return %c0_i32, %c0_i32_0 : i32, i32
  }
  func.func @transform_6(%arg0: i32) -> (i32, i32) {
    %c0_i32 = arith.constant 0 : i32
    %c0_i32_0 = arith.constant 0 : i32
    %c0_i32_1 = arith.constant 0 : i32
    return %c0_i32, %c0_i32_0 : i32, i32
  }
  func.func @transform_7(%arg0: i32) -> (i32, i32) {
    %c0_i32 = arith.constant 0 : i32
    %c0_i32_0 = arith.constant 0 : i32
    %c0_i32_1 = arith.constant 0 : i32
    return %c0_i32, %c0_i32_0 : i32, i32
  }
  func.func @transform_8(%arg0: i32) -> (i32, i32) {
    %c0_i32 = arith.constant 0 : i32
    %c0_i32_0 = arith.constant 0 : i32
    %c0_i32_1 = arith.constant 0 : i32
    return %c0_i32, %c0_i32_0 : i32, i32
  }
  func.func @transform_9(%arg0: i32) -> (i32, i32) {
    %c0_i32 = arith.constant 0 : i32
    %c0_i32_0 = arith.constant 0 : i32
    return %c0_i32, %arg0 : i32, i32
  }
}

</mosaic_0001>

<llo_original>
// kernel: tpu_custom_call.1
$region0: #{tpu_custom_call.1}
  #allocation0 [shape = 'u32[]', space=smem, size = 0x4, offset = 0x4, fixed_abs, tag = 'smem constant byte address 0x4 - core index']
  #allocation1 [shape = 'u32[144,128]{1,0:T(1,128)}', space=vmem, size = 0x12000, scoped, tag = 'internal scratch']
  #allocation2 [shape = 'f32[1,1]{1,0:T(1,128)S(6)}', space=smem, size = 0x200, scoped, tag = 'scoped memory for tpu_custom_call.1']
  %s0 = inlined_call_operand.vmem [shape: f32[256,48], index: 0, kind: input, shape index: {}]
  %s1 = inlined_call_operand.vmem [shape: f32[256,16], index: 1, kind: input, shape index: {}]
  %s2 = inlined_call_operand.vmem [shape: f32[48,128], index: 2, kind: input, shape index: {}]
  %s3 = inlined_call_operand.vmem [shape: f32[16,128], index: 3, kind: input, shape index: {}]
  %s4 = inlined_call_operand.vmem [shape: f32[1,128], index: 4, kind: input, shape index: {}]
  %s5 = inlined_call_operand.vmem [shape: f32[128,128], index: 5, kind: input, shape index: {}]
  %s6 = inlined_call_operand.vmem [shape: f32[1,128], index: 6, kind: input, shape index: {}]
  %s7 = inlined_call_operand.vmem [shape: f32[1,128], index: 7, kind: input, shape index: {}]
  %s8 = inlined_call_operand.<no memory space> [shape: f32[1,1], index: 8, kind: input, shape index: {}]
  %s9 = inlined_call_operand.hbm [shape: f32[1,256], index: 9, kind: output, shape index: {}]
  %s10 = sld [smem:[#allocation0]]
  $region69: #{tpu_custom_call.1} parent=0
    _
  %s12 = ssub.s32 1, %s10
  %s13 = scalar_select 0, %s12, %s10
  %14 = sst [smem:[#allocation2]] %s8
  $region1: #{tpu_custom_call.1} parent=0
    #allocation3 [shape = 'u8[1024]{0}', space=vmem, size = 0x400, scoped, tag = 'output window, operand 0']
    #allocation4 [shape = 's32[2]{0}', space=sflag, size = 0x8, scoped, tag = 'scoped memory for tpu_custom_call.1']
    %15 = vsyncpa [#allocation4], 0
    %s16 = scalar_lea.sflag [#allocation4], 1
    %17 = vsyncpa %s16, 0
    loop: start=0, step=1, limit=4
    $region2: #{tpu_custom_call.1} parent=1 // loop_pre_header
      _
    $region3: #{tpu_custom_call.1} parent=1 // loop_header
      %s19 = sphi 0, %s23
      %p20 = scmp.ge.s32.totalorder %s19, 4
      %s29 = sphi 0, %s31
      %s32 = sphi 0, %s29
      %s33 = sphi 0, %s32
      %s49 = sphi 0, %s33
      %s55 = sphi 0, %s57
      %s58 = sphi 0, %s55
      %s59 = sphi 0, %s58
      %s75 = sphi 0, %s59
      %s79 = sphi 0, %s79
      %s81 = sphi 0, %s79
      %s82 = sphi 0, %s81
      %s96 = sphi 0, %s82
      %s100 = sphi 0, %s100
      %s102 = sphi 0, %s100
      %s103 = sphi 0, %s102
      %s117 = sphi 0, %s103
      %s121 = sphi 0, %s121
      %s123 = sphi 0, %s121
      %s124 = sphi 0, %s123
      %s138 = sphi 0, %s124
      %s142 = sphi 0, %s142
      %s144 = sphi 0, %s142
      %s145 = sphi 0, %s144
      %s159 = sphi 0, %s145
      %s163 = sphi 0, %s163
      %s165 = sphi 0, %s163
      %s166 = sphi 0, %s165
      %s180 = sphi 0, %s166
      %s184 = sphi 0, %s184
      %s186 = sphi 0, %s184
      %s187 = sphi 0, %s186
      %s201 = sphi 0, %s187
      %s205 = sphi 0, %s205
      %s207 = sphi 0, %s205
      %s208 = sphi 0, %s207
      %s222 = sphi 0, %s208
      %s228 = sphi 0, %s230
      %s231 = sphi 0, %s228
      %s232 = sphi 0, %s231
      %s248 = sphi 0, %s232
    $region4: #{tpu_custom_call.1} parent=1 // loop_header_branch
      %22 = sbr.rel (%p20) target = $region8
    $region5: #{tpu_custom_call.1} parent=1 // loop_body
      %s24 = ssub.s32 %s19, 1
      %s25 = ssub.s32 %s19, 2
      %s26 = sadd.s32 %s19, 1
      %s27 = ssub.s32 %s19, %s26
      %p28 = scmp.eq.s32.totalorder %s27, 0
      %s30 = sadd.s32 %s29, 1
      %s31 = scalar_select %p28, %s29, %s30
      %p34 = pneg %p28
      %p35 = scmp.eq.s32.totalorder %s19, 1
      %p36 = por %p34, %p35
      %p37 = scmp.ne.s32.totalorder %s29, %s32
      %p38 = scmp.eq.s32.totalorder %s19, 0
      %p39 = por %p37, %p38
      %p40 = scmp.ne.s32.totalorder %s29, %s32
      %p41 = scmp.eq.s32.totalorder %s24, 1
      %p42 = por %p40, %p41
      %p43 = scmp.ne.s32.totalorder %s32, %s33
      %p44 = scmp.eq.s32.totalorder %s24, 0
      %p45 = por %p43, %p44
      %p46 = scmp.ne.s32.totalorder %s32, %s33
      %p47 = scmp.eq.s32.totalorder %s25, 1
      %p48 = por %p46, %p47
      %p50 = scmp.ne.s32.totalorder %s33, %s49
      %p51 = scmp.eq.s32.totalorder %s25, 0
      %p52 = por %p50, %p51
      %s53 = ssub.s32 %s19, %s26
      %p54 = scmp.eq.s32.totalorder %s53, 0
      %s56 = sadd.s32 %s55, 1
      %s57 = scalar_select %p54, %s55, %s56
      %p60 = pneg %p54
      %p61 = scmp.eq.s32.totalorder %s19, 1
      %p62 = por %p60, %p61
      %p63 = scmp.ne.s32.totalorder %s55, %s58
      %p64 = scmp.eq.s32.totalorder %s19, 0
      %p65 = por %p63, %p64
      %p66 = scmp.ne.s32.totalorder %s55, %s58
      %p67 = scmp.eq.s32.totalorder %s24, 1
      %p68 = por %p66, %p67
      %p69 = scmp.ne.s32.totalorder %s58, %s59
      %p70 = scmp.eq.s32.totalorder %s24, 0
      %p71 = por %p69, %p70
      %p72 = scmp.ne.s32.totalorder %s58, %s59
      %p73 = scmp.eq.s32.totalorder %s25, 1
      %p74 = por %p72, %p73
      %p76 = scmp.ne.s32.totalorder %s59, %s75
      %p77 = scmp.eq.s32.totalorder %s25, 0
      %p78 = por %p76, %p77
      %s80 = sadd.s32 %s79, 1
      %p83 = scmp.eq.s32.totalorder %s19, 1
      %p84 = scmp.ne.s32.totalorder %s79, %s81
      %p85 = scmp.eq.s32.totalorder %s19, 0
      %p86 = por %p84, %p85
      %p87 = scmp.ne.s32.totalorder %s79, %s81
      %p88 = scmp.eq.s32.totalorder %s24, 1
      %p89 = por %p87, %p88
      %p90 = scmp.ne.s32.totalorder %s81, %s82
      %p91 = scmp.eq.s32.totalorder %s24, 0
      %p92 = por %p90, %p91
      %p93 = scmp.ne.s32.totalorder %s81, %s82
      %p94 = scmp.eq.s32.totalorder %s25, 1
      %p95 = por %p93, %p94
      %p97 = scmp.ne.s32.totalorder %s82, %s96
      %p98 = scmp.eq.s32.totalorder %s25, 0
      %p99 = por %p97, %p98
      %s101 = sadd.s32 %s100, 1
      %p104 = scmp.eq.s32.totalorder %s19, 1
      %p105 = scmp.ne.s32.totalorder %s100, %s102
      %p106 = scmp.eq.s32.totalorder %s19, 0
      %p107 = por %p105, %p106
      %p108 = scmp.ne.s32.totalorder %s100, %s102
      %p109 = scmp.eq.s32.totalorder %s24, 1
      %p110 = por %p108, %p109
      %p111 = scmp.ne.s32.totalorder %s102, %s103
      %p112 = scmp.eq.s32.totalorder %s24, 0
      %p113 = por %p111, %p112
      %p114 = scmp.ne.s32.totalorder %s102, %s103
      %p115 = scmp.eq.s32.totalorder %s25, 1
      %p116 = por %p114, %p115
      %p118 = scmp.ne.s32.totalorder %s103, %s117
      %p119 = scmp.eq.s32.totalorder %s25, 0
      %p120 = por %p118, %p119
      %s122 = sadd.s32 %s121, 1
      %p125 = scmp.eq.s32.totalorder %s19, 1
      %p126 = scmp.ne.s32.totalorder %s121, %s123
      %p127 = scmp.eq.s32.totalorder %s19, 0
      %p128 = por %p126, %p127
      %p129 = scmp.ne.s32.totalorder %s121, %s123
      %p130 = scmp.eq.s32.totalorder %s24, 1
      %p131 = por %p129, %p130
      %p132 = scmp.ne.s32.totalorder %s123, %s124
      %p133 = scmp.eq.s32.totalorder %s24, 0
      %p134 = por %p132, %p133
      %p135 = scmp.ne.s32.totalorder %s123, %s124
      %p136 = scmp.eq.s32.totalorder %s25, 1
      %p137 = por %p135, %p136
      %p139 = scmp.ne.s32.totalorder %s124, %s138
      %p140 = scmp.eq.s32.totalorder %s25, 0
      %p141 = por %p139, %p140
      %s143 = sadd.s32 %s142, 1
      %p146 = scmp.eq.s32.totalorder %s19, 1
      %p147 = scmp.ne.s32.totalorder %s142, %s144
      %p148 = scmp.eq.s32.totalorder %s19, 0
      %p149 = por %p147, %p148
      %p150 = scmp.ne.s32.totalorder %s142, %s144
      %p151 = scmp.eq.s32.totalorder %s24, 1
      %p152 = por %p150, %p151
      %p153 = scmp.ne.s32.totalorder %s144, %s145
      %p154 = scmp.eq.s32.totalorder %s24, 0
      %p155 = por %p153, %p154
      %p156 = scmp.ne.s32.totalorder %s144, %s145
      %p157 = scmp.eq.s32.totalorder %s25, 1
      %p158 = por %p156, %p157
      %p160 = scmp.ne.s32.totalorder %s145, %s159
      %p161 = scmp.eq.s32.totalorder %s25, 0
      %p162 = por %p160, %p161
      %s164 = sadd.s32 %s163, 1
      %p167 = scmp.eq.s32.totalorder %s19, 1
      %p168 = scmp.ne.s32.totalorder %s163, %s165
      %p169 = scmp.eq.s32.totalorder %s19, 0
      %p170 = por %p168, %p169
      %p171 = scmp.ne.s32.totalorder %s163, %s165
      %p172 = scmp.eq.s32.totalorder %s24, 1
      %p173 = por %p171, %p172
      %p174 = scmp.ne.s32.totalorder %s165, %s166
      %p175 = scmp.eq.s32.totalorder %s24, 0
      %p176 = por %p174, %p175
      %p177 = scmp.ne.s32.totalorder %s165, %s166
      %p178 = scmp.eq.s32.totalorder %s25, 1
      %p179 = por %p177, %p178
      %p181 = scmp.ne.s32.totalorder %s166, %s180
      %p182 = scmp.eq.s32.totalorder %s25, 0
      %p183 = por %p181, %p182
      %s185 = sadd.s32 %s184, 1
      %p188 = scmp.eq.s32.totalorder %s19, 1
      %p189 = scmp.ne.s32.totalorder %s184, %s186
      %p190 = scmp.eq.s32.totalorder %s19, 0
      %p191 = por %p189, %p190
      %p192 = scmp.ne.s32.totalorder %s184, %s186
      %p193 = scmp.eq.s32.totalorder %s24, 1
      %p194 = por %p192, %p193
      %p195 = scmp.ne.s32.totalorder %s186, %s187
      %p196 = scmp.eq.s32.totalorder %s24, 0
      %p197 = por %p195, %p196
      %p198 = scmp.ne.s32.totalorder %s186, %s187
      %p199 = scmp.eq.s32.totalorder %s25, 1
      %p200 = por %p198, %p199
      %p202 = scmp.ne.s32.totalorder %s187, %s201
      %p203 = scmp.eq.s32.totalorder %s25, 0
      %p204 = por %p202, %p203
      %s206 = sadd.s32 %s205, 1
      %p209 = scmp.eq.s32.totalorder %s19, 1
      %p210 = scmp.ne.s32.totalorder %s205, %s207
      %p211 = scmp.eq.s32.totalorder %s19, 0
      %p212 = por %p210, %p211
      %p213 = scmp.ne.s32.totalorder %s205, %s207
      %p214 = scmp.eq.s32.totalorder %s24, 1
      %p215 = por %p213, %p214
      %p216 = scmp.ne.s32.totalorder %s207, %s208
      %p217 = scmp.eq.s32.totalorder %s24, 0
      %p218 = por %p216, %p217
      %p219 = scmp.ne.s32.totalorder %s207, %s208
      %p220 = scmp.eq.s32.totalorder %s25, 1
      %p221 = por %p219, %p220
      %p223 = scmp.ne.s32.totalorder %s208, %s222
      %p224 = scmp.eq.s32.totalorder %s25, 0
      %p225 = por %p223, %p224
      %s226 = ssub.s32 %s19, %s26
      %p227 = scmp.eq.s32.totalorder %s226, 0
      %s229 = sadd.s32 %s228, 1
      %s230 = scalar_select %p227, %s228, %s229
      %p233 = pneg %p227
      %p234 = scmp.eq.s32.totalorder %s19, 1
      %p235 = por %p233, %p234
      %p236 = scmp.ne.s32.totalorder %s228, %s231
      %p237 = scmp.eq.s32.totalorder %s19, 0
      %p238 = por %p236, %p237
      %p239 = scmp.ne.s32.totalorder %s228, %s231
      %p240 = scmp.eq.s32.totalorder %s24, 1
      %p241 = por %p239, %p240
      %p242 = scmp.ne.s32.totalorder %s231, %s232
      %p243 = scmp.eq.s32.totalorder %s24, 0
      %p244 = por %p242, %p243
      %p245 = scmp.ne.s32.totalorder %s231, %s232
      %p246 = scmp.eq.s32.totalorder %s25, 1
      %p247 = por %p245, %p246
      %p249 = scmp.ne.s32.totalorder %s232, %s248
      %p250 = scmp.eq.s32.totalorder %s25, 0
      %p251 = por %p249, %p250
      %p252 = scmp.le.s32.totalorder 1, %s19
      %p253 = scmp.lt.s32.totalorder %s19, 3
      %p254 = pnand %p252, %p253
      %p255 = pneg %p254
      // Predicated region
      $region9: #{tpu_custom_call.1} parent=5 // pred_check
        _
      $region10: #{tpu_custom_call.1} parent=5 // pred_check_branch
        %257 = sbr.rel (%p254) target = $region12
      $region11: #{tpu_custom_call.1} parent=5 // pred_region
        %s258 = ssub.s32 %s19, 1
        // Predicated region
        $region13: #{tpu_custom_call.1} parent=11 // pred_check
          %p259 = pneg %p92
        $region14: #{tpu_custom_call.1} parent=11 // pred_check_branch
          %261 = sbr.rel (%p259) target = $region16
        $region15: #{tpu_custom_call.1} parent=11 // pred_region
          _
        $region16: #{tpu_custom_call.1} parent=11 // pred_fallthru
          _
        // Predicated region
        $region17: #{tpu_custom_call.1} parent=11 // pred_check
          %p262 = pneg %p113
        $region18: #{tpu_custom_call.1} parent=11 // pred_check_branch
          %264 = sbr.rel (%p262) target = $region20
        $region19: #{tpu_custom_call.1} parent=11 // pred_region
          _
        $region20: #{tpu_custom_call.1} parent=11 // pred_fallthru
          _
        // Predicated region
        $region21: #{tpu_custom_call.1} parent=11 // pred_check
          %p265 = pneg %p134
        $region22: #{tpu_custom_call.1} parent=11 // pred_check_branch
          %267 = sbr.rel (%p265) target = $region24
        $region23: #{tpu_custom_call.1} parent=11 // pred_region
          _
        $region24: #{tpu_custom_call.1} parent=11 // pred_fallthru
          _
        // Predicated region
        $region25: #{tpu_custom_call.1} parent=11 // pred_check
          %p268 = pneg %p155
        $region26: #{tpu_custom_call.1} parent=11 // pred_check_branch
          %270 = sbr.rel (%p268) target = $region28
        $region27: #{tpu_custom_call.1} parent=11 // pred_region
          _
        $region28: #{tpu_custom_call.1} parent=11 // pred_fallthru
          _
        // Predicated region
        $region29: #{tpu_custom_call.1} parent=11 // pred_check
          %p271 = pneg %p176
        $region30: #{tpu_custom_call.1} parent=11 // pred_check_branch
          %273 = sbr.rel (%p271) target = $region32
        $region31: #{tpu_custom_call.1} parent=11 // pred_region
          _
        $region32: #{tpu_custom_call.1} parent=11 // pred_fallthru
          _
        // Predicated region
        $region33: #{tpu_custom_call.1} parent=11 // pred_check
          %p274 = pneg %p197
        $region34: #{tpu_custom_call.1} parent=11 // pred_check_branch
          %276 = sbr.rel (%p274) target = $region36
        $region35: #{tpu_custom_call.1} parent=11 // pred_region
          _
        $region36: #{tpu_custom_call.1} parent=11 // pred_fallthru
          _
        // Predicated region
        $region37: #{tpu_custom_call.1} parent=11 // pred_check
          %p277 = pneg %p218
        $region38: #{tpu_custom_call.1} parent=11 // pred_check_branch
          %279 = sbr.rel (%p277) target = $region40
        $region39: #{tpu_custom_call.1} parent=11 // pred_region
          _
        $region40: #{tpu_custom_call.1} parent=11 // pred_fallthru
          _
      $region12: #{tpu_custom_call.1} parent=5 // pred_fallthru
        _
      %p280 = scmp.lt.s32.totalorder %s19, 2
      // Predicated region
      $region41: #{tpu_custom_call.1} parent=5 // pred_check
        %p281 = pneg %p280
      $region42: #{tpu_custom_call.1} parent=5 // pred_check_branch
        %283 = sbr.rel (%p281) target = $region44
      $region43: #{tpu_custom_call.1} parent=5 // pred_region
        // Predicated region
        $region45: #{tpu_custom_call.1} parent=43 // pred_check
          %p284 = pneg %p39
        $region46: #{tpu_custom_call.1} parent=43 // pred_check_branch
          %286 = sbr.rel (%p284) target = $region48
        $region47: #{tpu_custom_call.1} parent=43 // pred_region
          %s287 = smul.u32 16, %s19
          %p288 = scmp.lt.s32.totalorder %s287, 31
          %s289 = scalar_select %p288, %s287, 31
          %s290 = smul.addr %s289, 8
          %s291 = scalar_lea.vmem %s0, %s290
          %s292 = smul.u32 16, %s19
        $region48: #{tpu_custom_call.1} parent=43 // pred_fallthru
          _
        // Predicated region
        $region49: #{tpu_custom_call.1} parent=43 // pred_check
          %p293 = pneg %p65
        $region50: #{tpu_custom_call.1} parent=43 // pred_check_branch
          %295 = sbr.rel (%p293) target = $region52
        $region51: #{tpu_custom_call.1} parent=43 // pred_region
          %s296 = smul.u32 16, %s19
          %p297 = scmp.lt.s32.totalorder %s296, 31
          %s298 = scalar_select %p297, %s296, 31
          %s299 = smul.addr %s298, 8
          %s300 = scalar_lea.vmem %s1, %s299
          %s301 = smul.u32 16, %s19
        $region52: #{tpu_custom_call.1} parent=43 // pred_fallthru
          _
      $region44: #{tpu_custom_call.1} parent=5 // pred_fallthru
        _
      %p302 = scmp.le.s32.totalorder 1, %s19
      %p303 = scmp.lt.s32.totalorder %s19, 3
      %p304 = pnand %p302, %p303
      %p305 = pneg %p304
      // Predicated region
      $region53: #{tpu_custom_call.1} parent=5 // pred_check
        _
      $region54: #{tpu_custom_call.1} parent=5 // pred_check_branch
        %307 = sbr.rel (%p304) target = $region56
      $region55: #{tpu_custom_call.1} parent=5 // pred_region
        %s308 = ssub.s32 %s19, 1
        %s309 = smul.u32 16, %s24
        %p310 = scmp.lt.s32.totalorder %s309, 31
        %s311 = scalar_select %p310, %s309, 31
        %s312 = smul.addr %s311, 8
        %s313 = scalar_lea.vmem %s0, %s312
        %p314 = pneg %p45
        %p315 = pneg %p42
        %s316 = smul.u32 16, %s24
        %p317 = scmp.lt.s32.totalorder %s316, 31
        %s318 = scalar_select %p317, %s316, 31
        %s319 = smul.addr %s318, 8
        %s320 = scalar_lea.vmem %s1, %s319
        %p321 = pneg %p71
        %p322 = pneg %p68
        %p323 = pneg %p92
        %p324 = pneg %p89
        %p325 = pneg %p113
        %p326 = pneg %p110
        %p327 = pneg %p134
        %p328 = pneg %p131
        %p329 = pneg %p155
        %p330 = pneg %p152
        %p331 = pneg %p176
        %p332 = pneg %p173
        %p333 = pneg %p197
        %p334 = pneg %p194
        %p335 = pneg %p218
        %p336 = pneg %p215
        %p337 = pneg %p244
        %p338 = pneg %p241
        %s339 = sand.u32 %s231, 1
        %s340 = scalar_lea.sflag [#allocation4], %s339
        %s341 = sand.u32 %s231, 1
        %s342 = scalar_lea.vmem [#allocation3], %s341
        %s343 = smul.u32 16, %s24
        %p344 = scmp.lt.s32.totalorder %s343, 31
        %s345 = scalar_select %p344, %s343, 31
        %s346 = smul.addr %s345, 8
        %s347 = scalar_lea.vmem %s0, %s346
        %s348 = smul.u32 16, %s24
        %s349 = smul.u32 16, %s24
        %p350 = scmp.lt.s32.totalorder %s349, 31
        %s351 = scalar_select %p350, %s349, 31
        %s352 = smul.addr %s351, 8
        %s353 = scalar_lea.vmem %s1, %s352
        %s354 = smul.u32 16, %s24
        %v355 = vld [vmem:[%s347] sm:$0xff]
        %v356 = vld [vmem:[%s347 + $0x8] sm:$0xff]
        %v357 = vld [vmem:[%s347 + $0x10] sm:$0xff]
        %v358 = vld [vmem:[%s347 + $0x18] sm:$0xff]
        %v359 = vld [vmem:[%s347 + $0x20] sm:$0xff]
        %v360 = vld [vmem:[%s347 + $0x28] sm:$0xff]
        %v361 = vld [vmem:[%s347 + $0x30] sm:$0xff]
        %v362 = vld [vmem:[%s347 + $0x38] sm:$0xff]
        %v363 = vld [vmem:[%s347 + $0x40] sm:$0xff]
        %v364 = vld [vmem:[%s347 + $0x48] sm:$0xff]
        %v365 = vld [vmem:[%s347 + $0x50] sm:$0xff]
        %v366 = vld [vmem:[%s347 + $0x58] sm:$0xff]
        %v367 = vld [vmem:[%s347 + $0x60] sm:$0xff]
        %v368 = vld [vmem:[%s347 + $0x68] sm:$0xff]
        %v369 = vld [vmem:[%s347 + $0x70] sm:$0xff]
        %v370 = vld [vmem:[%s347 + $0x78] sm:$0xff]
        %v371 = vld [vmem:[%s2] sm:$0xff]
        %v372 = vld [vmem:[%s2 + $0x8] sm:$0xff]
        %v373 = vld [vmem:[%s2 + $0x10] sm:$0xff]
        %v374 = vld [vmem:[%s2 + $0x18] sm:$0xff]
        %v375 = vld [vmem:[%s2 + $0x20] sm:$0xff]
        %v376 = vld [vmem:[%s2 + $0x28] sm:$0xff]
        %v377 = vld [vmem:[%s353] sm:$0xff]
        %v378 = vld [vmem:[%s353 + $0x8] sm:$0xff]
        %v379 = vld [vmem:[%s353 + $0x10] sm:$0xff]
        %v380 = vld [vmem:[%s353 + $0x18] sm:$0xff]
        %v381 = vld [vmem:[%s353 + $0x20] sm:$0xff]
        %v382 = vld [vmem:[%s353 + $0x28] sm:$0xff]
        %v383 = vld [vmem:[%s353 + $0x30] sm:$0xff]
        %v384 = vld [vmem:[%s353 + $0x38] sm:$0xff]
        %v385 = vld [vmem:[%s353 + $0x40] sm:$0xff]
        %v386 = vld [vmem:[%s353 + $0x48] sm:$0xff]
        %v387 = vld [vmem:[%s353 + $0x50] sm:$0xff]
        %v388 = vld [vmem:[%s353 + $0x58] sm:$0xff]
        %v389 = vld [vmem:[%s353 + $0x60] sm:$0xff]
        %v390 = vld [vmem:[%s353 + $0x68] sm:$0xff]
        %v391 = vld [vmem:[%s353 + $0x70] sm:$0xff]
        %v392 = vld [vmem:[%s353 + $0x78] sm:$0xff]
        %v393 = vld [vmem:[%s3] sm:$0xff]
        %v394 = vld [vmem:[%s3 + $0x8] sm:$0xff]
        %vm395 = vcmask 130048
        %v397 = vsel %vm395, %v377, 0
        %v400 = vsel %vm395, %v378, 0
        %v403 = vsel %vm395, %v379, 0
        %v406 = vsel %vm395, %v380, 0
        %v409 = vsel %vm395, %v381, 0
        %v412 = vsel %vm395, %v382, 0
        %v415 = vsel %vm395, %v383, 0
        %v418 = vsel %vm395, %v384, 0
        %v421 = vsel %vm395, %v385, 0
        %v424 = vsel %vm395, %v386, 0
        %v427 = vsel %vm395, %v387, 0
        %v430 = vsel %vm395, %v388, 0
        %v433 = vsel %vm395, %v389, 0
        %v436 = vsel %vm395, %v390, 0
        %v439 = vsel %vm395, %v391, 0
        %v442 = vsel %vm395, %v392, 0
        %444 = vmatprep.subr.mxu0 0.0
        %445 = vmatpush1.msra.mxu0 0.0
        %446 = vmatprep.subr.mxu0 0.0
        %447 = vmatpush1.msra.mxu0 0.0
        %448 = vmatprep.subr.mxu0 0.0
        %449 = vmatpush1.msra.mxu0 0.0
        %450 = vmatprep.subr.mxu0 0.0
        %451 = vmatpush1.msra.mxu0 0.0
        %452 = vmatprep.subr.mxu0 0.0
        %453 = vmatpush1.msra.mxu0 0.0
        %454 = vmatprep.subr.mxu0 0.0
        %455 = vmatpush1.msra.mxu0 0.0
        %456 = vmatprep.subr.mxu0 0.0
        %457 = vmatpush1.msra.mxu0 0.0
        %458 = vmatprep.subr.mxu0 0.0
        %459 = vmatpush1.msra.mxu0 0.0
        %460 = vmatprep.subr.mxu0 0.0
        %461 = vmatpush1.msra.mxu0 0.0
        %462 = vmatprep.subr.mxu0 0.0
        %463 = vmatpush1.msra.mxu0 0.0
        %464 = vmatprep.subr.mxu0 0.0
        %465 = vmatpush1.msra.mxu0 0.0
        %466 = vmatprep.subr.mxu0 0.0
        %467 = vmatpush1.msra.mxu0 0.0
        %468 = vmatprep.subr.mxu0 0.0
        %469 = vmatpush1.msra.mxu0 0.0
        %470 = vmatprep.subr.mxu0 0.0
        %471 = vmatpush1.msra.mxu0 0.0
        %472 = vmatprep.subr.mxu0 0.0
        %473 = vmatpush1.msra.mxu0 %v394
        %474 = vmatprep.subr.mxu0 0.0
        %475 = vmatpush1.msra.mxu0 %v393
        %476 = vmatprep.subr.mxu0 0.0
        %477 = vmatpush2.msra.mxu0 0.0
        %478 = vmatprep.subr.mxu0 0.0
        %479 = vmatpush2.msra.mxu0 0.0
        %480 = vmatprep.subr.mxu0 0.0
        %481 = vmatpush2.msra.mxu0 0.0
        %482 = vmatprep.subr.mxu0 0.0
        %483 = vmatpush2.msra.mxu0 0.0
        %484 = vmatprep.subr.mxu0 0.0
        %485 = vmatpush2.msra.mxu0 0.0
        %486 = vmatprep.subr.mxu0 0.0
        %487 = vmatpush2.msra.mxu0 0.0
        %488 = vmatprep.subr.mxu0 0.0
        %489 = vmatpush2.msra.mxu0 0.0
        %490 = vmatprep.subr.mxu0 0.0
        %491 = vmatpush2.msra.mxu0 0.0
        %492 = vmatprep.subr.mxu0 0.0
        %493 = vmatpush2.msra.mxu0 0.0
        %494 = vmatprep.subr.mxu0 0.0
        %495 = vmatpush2.msra.mxu0 0.0
        %496 = vmatprep.subr.mxu0 0.0
        %497 = vmatpush2.msra.mxu0 0.0
        %498 = vmatprep.subr.mxu0 0.0
        %499 = vmatpush2.msra.mxu0 0.0
        %500 = vmatprep.subr.mxu0 0.0
        %501 = vmatpush2.msra.mxu0 0.0
        %502 = vmatprep.subr.mxu0 0.0
        %503 = vmatpush2.msra.mxu0 0.0
        %504 = vmatprep.subr.mxu0 0.0
        %505 = vmatpush2.msra.mxu0 0.0
        %506 = vmatprep.subr.mxu0 0.0
        %507 = vmatpush2.msra.mxu0 0.0
        %508 = vmatprep.mubr.f32.mxu0 0.0
        %509 = vmatmul.mubr.f32.gmra.mxu0 %v397
        %v510 = vpop.f32.mrf.mxu0
        %v511 = vadd.f32 0.0, %v510
        %v512 = vpop.f32.mrf.mxu0
        %513 = vmatprep.mubr.f32.mxu0 0.0
        %514 = vmatmul.mubr.f32.gmra.mxu0 %v400
        %v515 = vpop.f32.mrf.mxu0
        %v516 = vadd.f32 0.0, %v515
        %v517 = vpop.f32.mrf.mxu0
        %518 = vmatprep.mubr.f32.mxu0 0.0
        %519 = vmatmul.mubr.f32.gmra.mxu0 %v403
        %v520 = vpop.f32.mrf.mxu0
        %v521 = vadd.f32 0.0, %v520
        %v522 = vpop.f32.mrf.mxu0
        %523 = vmatprep.mubr.f32.mxu0 0.0
        %524 = vmatmul.mubr.f32.gmra.mxu0 %v406
        %v525 = vpop.f32.mrf.mxu0
        %v526 = vadd.f32 0.0, %v525
        %v527 = vpop.f32.mrf.mxu0
        %528 = vmatprep.mubr.f32.mxu0 0.0
        %529 = vmatmul.mubr.f32.gmra.mxu0 %v409
        %v530 = vpop.f32.mrf.mxu0
        %v531 = vadd.f32 0.0, %v530
        %v532 = vpop.f32.mrf.mxu0
        %533 = vmatprep.mubr.f32.mxu0 0.0
        %534 = vmatmul.mubr.f32.gmra.mxu0 %v412
        %v535 = vpop.f32.mrf.mxu0
        %v536 = vadd.f32 0.0, %v535
        %v537 = vpop.f32.mrf.mxu0
        %538 = vmatprep.mubr.f32.mxu0 0.0
        %539 = vmatmul.mubr.f32.gmra.mxu0 %v415
        %v540 = vpop.f32.mrf.mxu0
        %v541 = vadd.f32 0.0, %v540
        %v542 = vpop.f32.mrf.mxu0
        %543 = vmatprep.mubr.f32.mxu0 0.0
        %544 = vmatmul.mubr.f32.gmra.mxu0 %v418
        %v545 = vpop.f32.mrf.mxu0
        %v546 = vadd.f32 0.0, %v545
        %v547 = vpop.f32.mrf.mxu0
        %548 = vmatprep.mubr.f32.mxu0 0.0
        %549 = vmatmul.mubr.f32.gmra.mxu0 %v421
        %v550 = vpop.f32.mrf.mxu0
        %v551 = vadd.f32 0.0, %v550
        %v552 = vpop.f32.mrf.mxu0
        %553 = vmatprep.mubr.f32.mxu0 0.0
        %554 = vmatmul.mubr.f32.gmra.mxu0 %v424
        %v555 = vpop.f32.mrf.mxu0
        %v556 = vadd.f32 0.0, %v555
        %v557 = vpop.f32.mrf.mxu0
        %558 = vmatprep.mubr.f32.mxu0 0.0
        %559 = vmatmul.mubr.f32.gmra.mxu0 %v427
        %v560 = vpop.f32.mrf.mxu0
        %v561 = vadd.f32 0.0, %v560
        %v562 = vpop.f32.mrf.mxu0
        %563 = vmatprep.mubr.f32.mxu0 0.0
        %564 = vmatmul.mubr.f32.gmra.mxu0 %v430
        %v565 = vpop.f32.mrf.mxu0
        %v566 = vadd.f32 0.0, %v565
        %v567 = vpop.f32.mrf.mxu0
        %568 = vmatprep.mubr.f32.mxu0 0.0
        %569 = vmatmul.mubr.f32.gmra.mxu0 %v433
        %v570 = vpop.f32.mrf.mxu0
        %v571 = vadd.f32 0.0, %v570
        %v572 = vpop.f32.mrf.mxu0
        %573 = vmatprep.mubr.f32.mxu0 0.0
        %574 = vmatmul.mubr.f32.gmra.mxu0 %v436
        %v575 = vpop.f32.mrf.mxu0
        %v576 = vadd.f32 0.0, %v575
        %v577 = vpop.f32.mrf.mxu0
        %578 = vmatprep.mubr.f32.mxu0 0.0
        %579 = vmatmul.mubr.f32.gmra.mxu0 %v439
        %v580 = vpop.f32.mrf.mxu0
        %v581 = vadd.f32 0.0, %v580
        %v582 = vpop.f32.mrf.mxu0
        %583 = vmatprep.mubr.f32.mxu0 0.0
        %584 = vmatmul.mubr.f32.gmra.mxu0 %v442
        %v585 = vpop.f32.mrf.mxu0
        %v586 = vadd.f32 0.0, %v585
        %v587 = vpop.f32.mrf.mxu0
        %588 = vdwg.mxu0
        %vm589 = vcmask 392192
        %v591 = vsel %vm589, %v355, 0
        %v594 = vsel %vm589, %v356, 0
        %v597 = vsel %vm589, %v357, 0
        %v600 = vsel %vm589, %v358, 0
        %v603 = vsel %vm589, %v359, 0
        %v606 = vsel %vm589, %v360, 0
        %v609 = vsel %vm589, %v361, 0
        %v612 = vsel %vm589, %v362, 0
        %v615 = vsel %vm589, %v363, 0
        %v618 = vsel %vm589, %v364, 0
        %v621 = vsel %vm589, %v365, 0
        %v624 = vsel %vm589, %v366, 0
        %v627 = vsel %vm589, %v367, 0
        %v630 = vsel %vm589, %v368, 0
        %v633 = vsel %vm589, %v369, 0
        %v636 = vsel %vm589, %v370, 0
        %638 = vmatprep.subr.mxu0 0.0
        %639 = vmatpush1.msra.mxu0 0.0
        %640 = vmatprep.subr.mxu0 0.0
        %641 = vmatpush1.msra.mxu0 0.0
        %642 = vmatprep.subr.mxu0 0.0
        %643 = vmatpush1.msra.mxu0 0.0
        %644 = vmatprep.subr.mxu0 0.0
        %645 = vmatpush1.msra.mxu0 0.0
        %646 = vmatprep.subr.mxu0 0.0
        %647 = vmatpush1.msra.mxu0 0.0
        %648 = vmatprep.subr.mxu0 0.0
        %649 = vmatpush1.msra.mxu0 0.0
        %650 = vmatprep.subr.mxu0 0.0
        %651 = vmatpush1.msra.mxu0 0.0
        %652 = vmatprep.subr.mxu0 0.0
        %653 = vmatpush1.msra.mxu0 0.0
        %654 = vmatprep.subr.mxu0 0.0
        %655 = vmatpush1.msra.mxu0 0.0
        %656 = vmatprep.subr.mxu0 0.0
        %657 = vmatpush1.msra.mxu0 0.0
        %658 = vmatprep.subr.mxu0 0.0
        %659 = vmatpush1.msra.mxu0 %v376
        %660 = vmatprep.subr.mxu0 0.0
        %661 = vmatpush1.msra.mxu0 %v375
        %662 = vmatprep.subr.mxu0 0.0
        %663 = vmatpush1.msra.mxu0 %v374
        %664 = vmatprep.subr.mxu0 0.0
        %665 = vmatpush1.msra.mxu0 %v373
        %666 = vmatprep.subr.mxu0 0.0
        %667 = vmatpush1.msra.mxu0 %v372
        %668 = vmatprep.subr.mxu0 0.0
        %669 = vmatpush1.msra.mxu0 %v371
        %670 = vmatprep.subr.mxu0 0.0
        %671 = vmatpush2.msra.mxu0 0.0
        %672 = vmatprep.subr.mxu0 0.0
        %673 = vmatpush2.msra.mxu0 0.0
        %674 = vmatprep.subr.mxu0 0.0
        %675 = vmatpush2.msra.mxu0 0.0
        %676 = vmatprep.subr.mxu0 0.0
        %677 = vmatpush2.msra.mxu0 0.0
        %678 = vmatprep.subr.mxu0 0.0
        %679 = vmatpush2.msra.mxu0 0.0
        %680 = vmatprep.subr.mxu0 0.0
        %681 = vmatpush2.msra.mxu0 0.0
        %682 = vmatprep.subr.mxu0 0.0
        %683 = vmatpush2.msra.mxu0 0.0
        %684 = vmatprep.subr.mxu0 0.0
        %685 = vmatpush2.msra.mxu0 0.0
        %686 = vmatprep.subr.mxu0 0.0
        %687 = vmatpush2.msra.mxu0 0.0
        %688 = vmatprep.subr.mxu0 0.0
        %689 = vmatpush2.msra.mxu0 0.0
        %690 = vmatprep.subr.mxu0 0.0
        %691 = vmatpush2.msra.mxu0 0.0
        %692 = vmatprep.subr.mxu0 0.0
        %693 = vmatpush2.msra.mxu0 0.0
        %694 = vmatprep.subr.mxu0 0.0
        %695 = vmatpush2.msra.mxu0 0.0
        %696 = vmatprep.subr.mxu0 0.0
        %697 = vmatpush2.msra.mxu0 0.0
        %698 = vmatprep.subr.mxu0 0.0
        %699 = vmatpush2.msra.mxu0 0.0
        %700 = vmatprep.subr.mxu0 0.0
        %701 = vmatpush2.msra.mxu0 0.0
        %702 = vmatprep.mubr.f32.mxu0 0.0
        %703 = vmatmul.mubr.f32.gmra.mxu0 %v591
        %v704 = vpop.f32.mrf.mxu0
        %v705 = vadd.f32 %v511, %v704
        %v706 = vpop.f32.mrf.mxu0
        %707 = vmatprep.mubr.f32.mxu0 0.0
        %708 = vmatmul.mubr.f32.gmra.mxu0 %v594
        %v709 = vpop.f32.mrf.mxu0
        %v710 = vadd.f32 %v516, %v709
        %v711 = vpop.f32.mrf.mxu0
        %712 = vmatprep.mubr.f32.mxu0 0.0
        %713 = vmatmul.mubr.f32.gmra.mxu0 %v597
        %v714 = vpop.f32.mrf.mxu0
        %v715 = vadd.f32 %v521, %v714
        %v716 = vpop.f32.mrf.mxu0
        %717 = vmatprep.mubr.f32.mxu0 0.0
        %718 = vmatmul.mubr.f32.gmra.mxu0 %v600
        %v719 = vpop.f32.mrf.mxu0
        %v720 = vadd.f32 %v526, %v719
        %v721 = vpop.f32.mrf.mxu0
        %722 = vmatprep.mubr.f32.mxu0 0.0
        %723 = vmatmul.mubr.f32.gmra.mxu0 %v603
        %v724 = vpop.f32.mrf.mxu0
        %v725 = vadd.f32 %v531, %v724
        %v726 = vpop.f32.mrf.mxu0
        %727 = vmatprep.mubr.f32.mxu0 0.0
        %728 = vmatmul.mubr.f32.gmra.mxu0 %v606
        %v729 = vpop.f32.mrf.mxu0
        %v730 = vadd.f32 %v536, %v729
        %v731 = vpop.f32.mrf.mxu0
        %732 = vmatprep.mubr.f32.mxu0 0.0
        %733 = vmatmul.mubr.f32.gmra.mxu0 %v609
        %v734 = vpop.f32.mrf.mxu0
        %v735 = vadd.f32 %v541, %v734
        %v736 = vpop.f32.mrf.mxu0
        %737 = vmatprep.mubr.f32.mxu0 0.0
        %738 = vmatmul.mubr.f32.gmra.mxu0 %v612
        %v739 = vpop.f32.mrf.mxu0
        %v740 = vadd.f32 %v546, %v739
        %v741 = vpop.f32.mrf.mxu0
        %742 = vmatprep.mubr.f32.mxu0 0.0
        %743 = vmatmul.mubr.f32.gmra.mxu0 %v615
        %v744 = vpop.f32.mrf.mxu0
        %v745 = vadd.f32 %v551, %v744
        %v746 = vpop.f32.mrf.mxu0
        %747 = vmatprep.mubr.f32.mxu0 0.0
        %748 = vmatmul.mubr.f32.gmra.mxu0 %v618
        %v749 = vpop.f32.mrf.mxu0
        %v750 = vadd.f32 %v556, %v749
        %v751 = vpop.f32.mrf.mxu0
        %752 = vmatprep.mubr.f32.mxu0 0.0
        %753 = vmatmul.mubr.f32.gmra.mxu0 %v621
        %v754 = vpop.f32.mrf.mxu0
        %v755 = vadd.f32 %v561, %v754
        %v756 = vpop.f32.mrf.mxu0
        %757 = vmatprep.mubr.f32.mxu0 0.0
        %758 = vmatmul.mubr.f32.gmra.mxu0 %v624
        %v759 = vpop.f32.mrf.mxu0
        %v760 = vadd.f32 %v566, %v759
        %v761 = vpop.f32.mrf.mxu0
        %762 = vmatprep.mubr.f32.mxu0 0.0
        %763 = vmatmul.mubr.f32.gmra.mxu0 %v627
        %v764 = vpop.f32.mrf.mxu0
        %v765 = vadd.f32 %v571, %v764
        %v766 = vpop.f32.mrf.mxu0
        %767 = vmatprep.mubr.f32.mxu0 0.0
        %768 = vmatmul.mubr.f32.gmra.mxu0 %v630
        %v769 = vpop.f32.mrf.mxu0
        %v770 = vadd.f32 %v576, %v769
        %v771 = vpop.f32.mrf.mxu0
        %772 = vmatprep.mubr.f32.mxu0 0.0
        %773 = vmatmul.mubr.f32.gmra.mxu0 %v633
        %v774 = vpop.f32.mrf.mxu0
        %v775 = vadd.f32 %v581, %v774
        %v776 = vpop.f32.mrf.mxu0
        %777 = vmatprep.mubr.f32.mxu0 0.0
        %778 = vmatmul.mubr.f32.gmra.mxu0 %v636
        %v779 = vpop.f32.mrf.mxu0
        %v780 = vadd.f32 %v586, %v779
        %v781 = vpop.f32.mrf.mxu0
        %782 = vdwg.mxu0
        %v783 = vld [vmem:[%s4] sm:$0x1]
        %v785 = vlaneseq
        %v786 = vshrl.u32 %v785, 7
        %v787 = vsub.s32 0, %v786
        %v788 = vrot.slane %v783, %v787
        %v790 = vadd.f32 %v705, %v788
        %v791 = vadd.f32 %v710, %v788
        %v792 = vadd.f32 %v715, %v788
        %v793 = vadd.f32 %v720, %v788
        %v794 = vadd.f32 %v725, %v788
        %v795 = vadd.f32 %v730, %v788
        %v796 = vadd.f32 %v735, %v788
        %v797 = vadd.f32 %v740, %v788
        %v798 = vadd.f32 %v745, %v788
        %v799 = vadd.f32 %v750, %v788
        %v800 = vadd.f32 %v755, %v788
        %v801 = vadd.f32 %v760, %v788
        %v802 = vadd.f32 %v765, %v788
        %v803 = vadd.f32 %v770, %v788
        %v804 = vadd.f32 %v775, %v788
        %v805 = vadd.f32 %v780, %v788
        %v806 = vmax.f32 %v790, 0.0
        %v807 = vmax.f32 %v791, 0.0
        %v808 = vmax.f32 %v792, 0.0
        %v809 = vmax.f32 %v793, 0.0
        %v810 = vmax.f32 %v794, 0.0
        %v811 = vmax.f32 %v795, 0.0
        %v812 = vmax.f32 %v796, 0.0
        %v813 = vmax.f32 %v797, 0.0
        %v814 = vmax.f32 %v798, 0.0
        %v815 = vmax.f32 %v799, 0.0
        %v816 = vmax.f32 %v800, 0.0
        %v817 = vmax.f32 %v801, 0.0
        %v818 = vmax.f32 %v802, 0.0
        %v819 = vmax.f32 %v803, 0.0
        %v820 = vmax.f32 %v804, 0.0
        %v821 = vmax.f32 %v805, 0.0
        %v822 = vld [vmem:[%s5] sm:$0xff]
        %v823 = vld [vmem:[%s5 + $0x8] sm:$0xff]
        %v824 = vld [vmem:[%s5 + $0x10] sm:$0xff]
        %v825 = vld [vmem:[%s5 + $0x18] sm:$0xff]
        %v826 = vld [vmem:[%s5 + $0x20] sm:$0xff]
        %v827 = vld [vmem:[%s5 + $0x28] sm:$0xff]
        %v828 = vld [vmem:[%s5 + $0x30] sm:$0xff]
        %v829 = vld [vmem:[%s5 + $0x38] sm:$0xff]
        %v830 = vld [vmem:[%s5 + $0x40] sm:$0xff]
        %v831 = vld [vmem:[%s5 + $0x48] sm:$0xff]
        %v832 = vld [vmem:[%s5 + $0x50] sm:$0xff]
        %v833 = vld [vmem:[%s5 + $0x58] sm:$0xff]
        %v834 = vld [vmem:[%s5 + $0x60] sm:$0xff]
        %v835 = vld [vmem:[%s5 + $0x68] sm:$0xff]
        %v836 = vld [vmem:[%s5 + $0x70] sm:$0xff]
        %v837 = vld [vmem:[%s5 + $0x78] sm:$0xff]
        %v838 = vld [vmem:[%s6] sm:$0x1]
        %v840 = vlaneseq
        %v841 = vshrl.u32 %v840, 7
        %v842 = vsub.s32 0, %v841
        %v843 = vrot.slane %v838, %v842
        %845 = vmatprep.subr.mxu0 0.0
        %846 = vmatpush1.msra.mxu0 %v837
        %847 = vmatprep.subr.mxu0 0.0
        %848 = vmatpush1.msra.mxu0 %v836
        %849 = vmatprep.subr.mxu0 0.0
        %850 = vmatpush1.msra.mxu0 %v835
        %851 = vmatprep.subr.mxu0 0.0
        %852 = vmatpush1.msra.mxu0 %v834
        %853 = vmatprep.subr.mxu0 0.0
        %854 = vmatpush1.msra.mxu0 %v833
        %855 = vmatprep.subr.mxu0 0.0
        %856 = vmatpush1.msra.mxu0 %v832
        %857 = vmatprep.subr.mxu0 0.0
        %858 = vmatpush1.msra.mxu0 %v831
        %859 = vmatprep.subr.mxu0 0.0
        %860 = vmatpush1.msra.mxu0 %v830
        %861 = vmatprep.subr.mxu0 0.0
        %862 = vmatpush1.msra.mxu0 %v829
        %863 = vmatprep.subr.mxu0 0.0
        %864 = vmatpush1.msra.mxu0 %v828
        %865 = vmatprep.subr.mxu0 0.0
        %866 = vmatpush1.msra.mxu0 %v827
        %867 = vmatprep.subr.mxu0 0.0
        %868 = vmatpush1.msra.mxu0 %v826
        %869 = vmatprep.subr.mxu0 0.0
        %870 = vmatpush1.msra.mxu0 %v825
        %871 = vmatprep.subr.mxu0 0.0
        %872 = vmatpush1.msra.mxu0 %v824
        %873 = vmatprep.subr.mxu0 0.0
        %874 = vmatpush1.msra.mxu0 %v823
        %875 = vmatprep.subr.mxu0 0.0
        %876 = vmatpush1.msra.mxu0 %v822
        %877 = vmatprep.subr.mxu0 0.0
        %878 = vmatpush2.msra.mxu0 0.0
        %879 = vmatprep.subr.mxu0 0.0
        %880 = vmatpush2.msra.mxu0 0.0
        %881 = vmatprep.subr.mxu0 0.0
        %882 = vmatpush2.msra.mxu0 0.0
        %883 = vmatprep.subr.mxu0 0.0
        %884 = vmatpush2.msra.mxu0 0.0
        %885 = vmatprep.subr.mxu0 0.0
        %886 = vmatpush2.msra.mxu0 0.0
        %887 = vmatprep.subr.mxu0 0.0
        %888 = vmatpush2.msra.mxu0 0.0
        %889 = vmatprep.subr.mxu0 0.0
        %890 = vmatpush2.msra.mxu0 0.0
        %891 = vmatprep.subr.mxu0 0.0
        %892 = vmatpush2.msra.mxu0 0.0
        %893 = vmatprep.subr.mxu0 0.0
        %894 = vmatpush2.msra.mxu0 0.0
        %895 = vmatprep.subr.mxu0 0.0
        %896 = vmatpush2.msra.mxu0 0.0
        %897 = vmatprep.subr.mxu0 0.0
        %898 = vmatpush2.msra.mxu0 0.0
        %899 = vmatprep.subr.mxu0 0.0
        %900 = vmatpush2.msra.mxu0 0.0
        %901 = vmatprep.subr.mxu0 0.0
        %902 = vmatpush2.msra.mxu0 0.0
        %903 = vmatprep.subr.mxu0 0.0
        %904 = vmatpush2.msra.mxu0 0.0
        %905 = vmatprep.subr.mxu0 0.0
        %906 = vmatpush2.msra.mxu0 0.0
        %907 = vmatprep.subr.mxu0 0.0
        %908 = vmatpush2.msra.mxu0 0.0
        %909 = vmatprep.mubr.f32.mxu0 0.0
        %910 = vmatmul.mubr.f32.gmra.mxu0 %v806
        %v911 = vpop.f32.mrf.mxu0
        %v912 = vadd.f32 %v843, %v911
        %v913 = vpop.f32.mrf.mxu0
        %914 = vmatprep.mubr.f32.mxu0 0.0
        %915 = vmatmul.mubr.f32.gmra.mxu0 %v807
        %v916 = vpop.f32.mrf.mxu0
        %v917 = vadd.f32 %v843, %v916
        %v918 = vpop.f32.mrf.mxu0
        %919 = vmatprep.mubr.f32.mxu0 0.0
        %920 = vmatmul.mubr.f32.gmra.mxu0 %v808
        %v921 = vpop.f32.mrf.mxu0
        %v922 = vadd.f32 %v843, %v921
        %v923 = vpop.f32.mrf.mxu0
        %924 = vmatprep.mubr.f32.mxu0 0.0
        %925 = vmatmul.mubr.f32.gmra.mxu0 %v809
        %v926 = vpop.f32.mrf.mxu0
        %v927 = vadd.f32 %v843, %v926
        %v928 = vpop.f32.mrf.mxu0
        %929 = vmatprep.mubr.f32.mxu0 0.0
        %930 = vmatmul.mubr.f32.gmra.mxu0 %v810
        %v931 = vpop.f32.mrf.mxu0
        %v932 = vadd.f32 %v843, %v931
        %v933 = vpop.f32.mrf.mxu0
        %934 = vmatprep.mubr.f32.mxu0 0.0
        %935 = vmatmul.mubr.f32.gmra.mxu0 %v811
        %v936 = vpop.f32.mrf.mxu0
        %v937 = vadd.f32 %v843, %v936
        %v938 = vpop.f32.mrf.mxu0
        %939 = vmatprep.mubr.f32.mxu0 0.0
        %940 = vmatmul.mubr.f32.gmra.mxu0 %v812
        %v941 = vpop.f32.mrf.mxu0
        %v942 = vadd.f32 %v843, %v941
        %v943 = vpop.f32.mrf.mxu0
        %944 = vmatprep.mubr.f32.mxu0 0.0
        %945 = vmatmul.mubr.f32.gmra.mxu0 %v813
        %v946 = vpop.f32.mrf.mxu0
        %v947 = vadd.f32 %v843, %v946
        %v948 = vpop.f32.mrf.mxu0
        %949 = vmatprep.mubr.f32.mxu0 0.0
        %950 = vmatmul.mubr.f32.gmra.mxu0 %v814
        %v951 = vpop.f32.mrf.mxu0
        %v952 = vadd.f32 %v843, %v951
        %v953 = vpop.f32.mrf.mxu0
        %954 = vmatprep.mubr.f32.mxu0 0.0
        %955 = vmatmul.mubr.f32.gmra.mxu0 %v815
        %v956 = vpop.f32.mrf.mxu0
        %v957 = vadd.f32 %v843, %v956
        %v958 = vpop.f32.mrf.mxu0
        %959 = vmatprep.mubr.f32.mxu0 0.0
        %960 = vmatmul.mubr.f32.gmra.mxu0 %v816
        %v961 = vpop.f32.mrf.mxu0
        %v962 = vadd.f32 %v843, %v961
        %v963 = vpop.f32.mrf.mxu0
        %964 = vmatprep.mubr.f32.mxu0 0.0
        %965 = vmatmul.mubr.f32.gmra.mxu0 %v817
        %v966 = vpop.f32.mrf.mxu0
        %v967 = vadd.f32 %v843, %v966
        %v968 = vpop.f32.mrf.mxu0
        %969 = vmatprep.mubr.f32.mxu0 0.0
        %970 = vmatmul.mubr.f32.gmra.mxu0 %v818
        %v971 = vpop.f32.mrf.mxu0
        %v972 = vadd.f32 %v843, %v971
        %v973 = vpop.f32.mrf.mxu0
        %974 = vmatprep.mubr.f32.mxu0 0.0
        %975 = vmatmul.mubr.f32.gmra.mxu0 %v819
        %v976 = vpop.f32.mrf.mxu0
        %v977 = vadd.f32 %v843, %v976
        %v978 = vpop.f32.mrf.mxu0
        %979 = vmatprep.mubr.f32.mxu0 0.0
        %980 = vmatmul.mubr.f32.gmra.mxu0 %v820
        %v981 = vpop.f32.mrf.mxu0
        %v982 = vadd.f32 %v843, %v981
        %v983 = vpop.f32.mrf.mxu0
        %984 = vmatprep.mubr.f32.mxu0 0.0
        %985 = vmatmul.mubr.f32.gmra.mxu0 %v821
        %v986 = vpop.f32.mrf.mxu0
        %v987 = vadd.f32 %v843, %v986
        %v988 = vpop.f32.mrf.mxu0
        %989 = vdwg.mxu0
        %v990 = vmax.f32 %v912, 0.0
        %v991 = vmax.f32 %v917, 0.0
        %v992 = vmax.f32 %v922, 0.0
        %v993 = vmax.f32 %v927, 0.0
        %v994 = vmax.f32 %v932, 0.0
        %v995 = vmax.f32 %v937, 0.0
        %v996 = vmax.f32 %v942, 0.0
        %v997 = vmax.f32 %v947, 0.0
        %v998 = vmax.f32 %v952, 0.0
        %v999 = vmax.f32 %v957, 0.0
        %v1000 = vmax.f32 %v962, 0.0
        %v1001 = vmax.f32 %v967, 0.0
        %v1002 = vmax.f32 %v972, 0.0
        %v1003 = vmax.f32 %v977, 0.0
        %v1004 = vmax.f32 %v982, 0.0
        %v1005 = vmax.f32 %v987, 0.0
        %v1006 = vld [vmem:[%s7] sm:$0x1]
        %s1007 = sld [smem:[#allocation2]]
        %v1008 = vstv %s1007
        %1009 = vmatprep.subr.mxu0 0.0
        %1010 = vmatpush1.xpose.msra.mxu0 %v1005
        %1011 = vmatprep.subr.mxu0 0.0
        %1012 = vmatpush1.xpose.msra.mxu0 %v1004
        %1013 = vmatprep.subr.mxu0 0.0
        %1014 = vmatpush1.xpose.msra.mxu0 %v1003
        %1015 = vmatprep.subr.mxu0 0.0
        %1016 = vmatpush1.xpose.msra.mxu0 %v1002
        %1017 = vmatprep.subr.mxu0 0.0
        %1018 = vmatpush1.xpose.msra.mxu0 %v1001
        %1019 = vmatprep.subr.mxu0 0.0
        %1020 = vmatpush1.xpose.msra.mxu0 %v1000
        %1021 = vmatprep.subr.mxu0 0.0
        %1022 = vmatpush1.xpose.msra.mxu0 %v999
        %1023 = vmatprep.subr.mxu0 0.0
        %1024 = vmatpush1.xpose.msra.mxu0 %v998
        %1025 = vmatprep.subr.mxu0 0.0
        %1026 = vmatpush1.xpose.msra.mxu0 %v997
        %1027 = vmatprep.subr.mxu0 0.0
        %1028 = vmatpush1.xpose.msra.mxu0 %v996
        %1029 = vmatprep.subr.mxu0 0.0
        %1030 = vmatpush1.xpose.msra.mxu0 %v995
        %1031 = vmatprep.subr.mxu0 0.0
        %1032 = vmatpush1.xpose.msra.mxu0 %v994
        %1033 = vmatprep.subr.mxu0 0.0
        %1034 = vmatpush1.xpose.msra.mxu0 %v993
        %1035 = vmatprep.subr.mxu0 0.0
        %1036 = vmatpush1.xpose.msra.mxu0 %v992
        %1037 = vmatprep.subr.mxu0 0.0
        %1038 = vmatpush1.xpose.msra.mxu0 %v991
        %1039 = vmatprep.subr.mxu0 0.0
        %1040 = vmatpush1.xpose.msra.mxu0 %v990
        %1041 = vmatprep.subr.mxu0 0.0
        %1042 = vmatpush2.xpose.msra.mxu0 0.0
        %1043 = vmatprep.subr.mxu0 0.0
        %1044 = vmatpush2.xpose.msra.mxu0 0.0
        %1045 = vmatprep.subr.mxu0 0.0
        %1046 = vmatpush2.xpose.msra.mxu0 0.0
        %1047 = vmatprep.subr.mxu0 0.0
        %1048 = vmatpush2.xpose.msra.mxu0 0.0
        %1049 = vmatprep.subr.mxu0 0.0
        %1050 = vmatpush2.xpose.msra.mxu0 0.0
        %1051 = vmatprep.subr.mxu0 0.0
        %1052 = vmatpush2.xpose.msra.mxu0 0.0
        %1053 = vmatprep.subr.mxu0 0.0
        %1054 = vmatpush2.xpose.msra.mxu0 0.0
        %1055 = vmatprep.subr.mxu0 0.0
        %1056 = vmatpush2.xpose.msra.mxu0 0.0
        %1057 = vmatprep.subr.mxu0 0.0
        %1058 = vmatpush2.xpose.msra.mxu0 0.0
        %1059 = vmatprep.subr.mxu0 0.0
        %1060 = vmatpush2.xpose.msra.mxu0 0.0
        %1061 = vmatprep.subr.mxu0 0.0
        %1062 = vmatpush2.xpose.msra.mxu0 0.0
        %1063 = vmatprep.subr.mxu0 0.0
        %1064 = vmatpush2.xpose.msra.mxu0 0.0
        %1065 = vmatprep.subr.mxu0 0.0
        %1066 = vmatpush2.xpose.msra.mxu0 0.0
        %1067 = vmatprep.subr.mxu0 0.0
        %1068 = vmatpush2.xpose.msra.mxu0 0.0
        %1069 = vmatprep.subr.mxu0 0.0
        %1070 = vmatpush2.xpose.msra.mxu0 0.0
        %1071 = vmatprep.subr.mxu0 0.0
        %1072 = vmatpush2.xpose.msra.mxu0 0.0
        %1073 = vmatprep.mubr.f32.mxu0 0.0
        %1074 = vmatmul.mubr.f32.gmra.mxu0 %v1006
        %v1075 = vpop.f32.mrf.mxu0
        %v1076 = vadd.f32 %v1008, %v1075
        %v1077 = vpop.f32.mrf.mxu0
        %1078 = vdwg.mxu0
        %1079 = vst [vmem:[%s342] sm:$0x1] %v1076
        %s1080 = sand.u32 %s231, 1
        %s1081 = scalar_lea.sflag [#allocation4], %s1080
        %s1082 = sand.u32 %s231, 1
        %s1083 = scalar_lea.vmem [#allocation3], %s1082
        // Predicated region
        $region57: #{tpu_custom_call.1} parent=55 // pred_check
          %p1084 = pneg %p241
        $region58: #{tpu_custom_call.1} parent=55 // pred_check_branch
          %1086 = sbr.rel (%p1084) target = $region60
        $region59: #{tpu_custom_call.1} parent=55 // pred_region
          %s1088 = ssub.s32 16, 16
          %1089 = vsyncadd %s1081, %s1088
          %s1090 = smul.addr %s24, 16
          %s1091 = scalar_lea.hbm %s9, %s1090
          %s1093 = sshll.u32 %s1083, 4
          %s1094 = int_to_ptr.vmem [resolvable:$true] %s1093
          %1096 = dma.vmem_to_hbm [thread:$0]  %s1094, 16, %s1091, %s1081
        $region60: #{tpu_custom_call.1} parent=55 // pred_fallthru
          _
      $region56: #{tpu_custom_call.1} parent=5 // pred_fallthru
        _
      %p1097 = scmp.le.s32.totalorder 2, %s19
      // Predicated region
      $region61: #{tpu_custom_call.1} parent=5 // pred_check
        %p1098 = pneg %p1097
      $region62: #{tpu_custom_call.1} parent=5 // pred_check_branch
        %1100 = sbr.rel (%p1098) target = $region64
      $region63: #{tpu_custom_call.1} parent=5 // pred_region
        %s1101 = ssub.s32 %s19, 2
        // Predicated region
        $region65: #{tpu_custom_call.1} parent=63 // pred_check
          %p1102 = pneg %p247
        $region66: #{tpu_custom_call.1} parent=63 // pred_check_branch
          %1104 = sbr.rel (%p1102) target = $region68
        $region67: #{tpu_custom_call.1} parent=63 // pred_region
          %s1105 = sand.u32 %s232, 1
          %s1106 = scalar_lea.sflag [#allocation4], %s1105
          %s1107 = sand.u32 %s232, 1
          %s1108 = scalar_lea.vmem [#allocation3], %s1107
          %1109 = dma.done %s1106, 16
        $region68: #{tpu_custom_call.1} parent=63 // pred_fallthru
          _
      $region64: #{tpu_custom_call.1} parent=5 // pred_fallthru
        _
    $region6: #{tpu_custom_call.1} parent=1 // loop_footer
      %s23 = sadd.s32 1, %s19
    $region7: #{tpu_custom_call.1} parent=1 // loop_footer_branch
      %18 = sbr.rel target = $region3
    $region8: #{tpu_custom_call.1} parent=1 // loop_exit
      _
    %1110 = vsyncpa [#allocation4], 1
    %s1111 = scalar_lea.sflag [#allocation4], 1
    %1112 = vsyncpa %s1111, 1

</llo_original>
